<compile_context>
chip_gen: v7x
topology: tpu7x:2x2x1
jax: 0.10.0
libtpu: 0.0.40
codegen_flags: <defaults>
</compile_context>

<pallas_src>
import functools

import jax
import jax.numpy as jnp
from jax.experimental import pallas as pl
from jax.experimental.pallas import tpu as pltpu


def _round_up(v, m):
    return ((v + m - 1) // m) * m


def _sage_layer_kernel(a_ref, xwl_ref, xwr_ref, invdeg_ref, b_ref, out_ref,
                       acc_ref, *, apply_relu):
    """One SAGEConv layer tile: row tile i (grid axis 0), contraction tile k (axis 1).

    a_ref     : [tm, tk] int8   raw edge counts A[i, j] = #edges j->i   (streamed)
    xwl_ref   : [tk, H]  bf16   (x @ W_l) rows of this contraction slice
    xwr_ref   : [tm, H]  f32    (x @ W_r) rows of this row tile         (resident over k)
    invdeg_ref: [tm, 1]  f32    1 / max(in_degree, 1)                   (resident over k)
    b_ref     : [1, H]   f32    lin_l bias                              (resident)
    out_ref   : [tm, H]         output tile (bf16 for layer 1, f32 for layer 2)
    acc_ref   : [tm, H]  f32    accumulator for A_counts @ (x @ W_l)
    """
    k = pl.program_id(1)

    @pl.when(k == 0)
    def _():
        acc_ref[...] = jnp.zeros_like(acc_ref)

    # Upcast the int8 count tile to bf16 (exact for small counts) and accumulate on the MXU.
    a = a_ref[...].astype(jnp.bfloat16)
    acc_ref[...] += jnp.dot(a, xwl_ref[...], preferred_element_type=jnp.float32)

    @pl.when(k == pl.num_programs(1) - 1)
    def _():
        # mean aggregation = (counts @ xWl) * 1/deg, then self term + bias (+ ReLU).
        out = acc_ref[...] * invdeg_ref[...] + xwr_ref[...] + b_ref[...]
        if apply_relu:
            out = jnp.maximum(out, 0.0)
        out_ref[...] = out.astype(out_ref.dtype)


def _sage_layer(a_counts, xwl, xwr, inv_deg, bias, *, apply_relu, out_dtype, tm, tk):
    n_row_pad, n_col_pad = a_counts.shape
    h = xwl.shape[1]
    grid = (n_row_pad // tm, n_col_pad // tk)

    # VMEM budget: double-buffered streams + resident tiles + accumulator, with headroom,
    # clamped below v7x's 64 MiB physical VMEM (v5e/v6e have 128 MiB, so this is safe there).
    out_bytes = jnp.dtype(out_dtype).itemsize
    need = (2 * tm * tk * 1            # A tile (int8), double buffered
            + 2 * tk * h * 2           # xWl tile (bf16)
            + 2 * tm * h * 4           # xWr tile (f32)
            + 2 * tm * 1 * 4           # inv_deg tile
            + 2 * tm * h * out_bytes   # out tile
            + tm * h * 4               # accumulator scratch
            + (1 << 20))
    vmem_limit = int(min(max(2 * need, 32 << 20), 56 << 20))

    return pl.pallas_call(
        functools.partial(_sage_layer_kernel, apply_relu=apply_relu),
        out_shape=jax.ShapeDtypeStruct((n_row_pad, h), out_dtype),
        grid_spec=pltpu.PrefetchScalarGridSpec(
            num_scalar_prefetch=0,
            grid=grid,
            in_specs=[
                pl.BlockSpec((tm, tk), lambda i, k: (i, k)),   # A counts (streamed)
                pl.BlockSpec((tk, h), lambda i, k: (k, 0)),    # x @ W_l   (streamed over k)
                pl.BlockSpec((tm, h), lambda i, k: (i, 0)),    # x @ W_r   (resident over k)
                pl.BlockSpec((tm, 1), lambda i, k: (i, 0)),    # 1/deg     (resident over k)
                pl.BlockSpec((1, h), lambda i, k: (0, 0)),     # bias
            ],
            out_specs=pl.BlockSpec((tm, h), lambda i, k: (i, 0)),
            scratch_shapes=[pltpu.VMEM((tm, h), jnp.float32)],
        ),
        compiler_params=pltpu.CompilerParams(
            dimension_semantics=("parallel", "arbitrary"),  # megacore on v7x, no-op v5e/v6e
            vmem_limit_bytes=vmem_limit,
        ),
    )(a_counts, xwl, xwr, inv_deg, bias)


def graph_sage_forward(x, edge_index, params, *, tm=512, tk=2048):
    """x: [N, Fin] f32, edge_index: [2, E] int32 (row0 = src, row1 = dst)."""
    n, _ = x.shape
    hidden = params["w1l"].shape[1]
    src, dst = edge_index[0], edge_index[1]

    # Tile selection: multiples of 128, capped at the 128-padded graph; rows and columns are
    # padded independently to their own tile size (no lcm blow-up).  Keep at least 2 row
    # tiles whenever the graph allows it so both v7x TensorCores get work.
    n128 = _round_up(n, 128)
    tk_e = max(128, (min(tk, n128) // 128) * 128)
    tm_e = max(128, (min(tm, n128) // 128) * 128)
    if n128 >= 256:
        tm_e = min(tm_e, max(128, ((n128 // 2) // 128) * 128))
    n_row_pad = _round_up(n, tm_e)
    n_col_pad = _round_up(n, tk_e)

    # Glue (not the hot path): dense padded adjacency of raw int8 edge counts
    # A[i, j] = #edges j -> i (exact in int8 for < 128 parallel edges), plus f32 in-degrees
    # computed directly from the edge list.  Padded rows/cols stay 0, so padded nodes
    # neither receive nor contaminate real aggregations (and are sliced away at the end).
    # TODO(synk): for large sparse graphs replace this dense A@x with a CSR gather +
    # segment-mean via PrefetchScalarGridSpec (O(E*F) instead of O(N^2*F) HBM traffic).
    a_counts = jnp.zeros((n_row_pad, n_col_pad), jnp.int8).at[dst, src].add(
        jnp.ones(src.shape, jnp.int8))
    deg = jnp.zeros((n_row_pad,), jnp.float32).at[dst].add(1.0)
    inv_deg = (1.0 / jnp.maximum(deg, 1.0)).reshape(n_row_pad, 1)

    def _pad_rows(arr, target):
        return jnp.zeros((target,) + arr.shape[1:], arr.dtype).at[: arr.shape[0]].set(arr)

    b1 = params["b1"].astype(jnp.float32).reshape(1, hidden)
    b2 = params["b2"].astype(jnp.float32).reshape(1, hidden)

    # Layer 1 (SAGEConv + ReLU).  The tiny N*F*H linear maps are precomputed here so the
    # kernel only streams A against a bf16 [N, H] operand and does a scale+add finalize.
    xwl1 = _pad_rows((x @ params["w1l"]).astype(jnp.bfloat16), n_col_pad)
    xwr1 = _pad_rows((x @ params["w1r"]).astype(jnp.float32), n_row_pad)
    h1 = _sage_layer(a_counts, xwl1, xwr1, inv_deg, b1, apply_relu=True,
                     out_dtype=jnp.bfloat16, tm=tm_e, tk=tk_e)[:n]

    # Layer 2 (SAGEConv, no ReLU); h1 comes straight out of the layer-1 kernel as bf16.
    xwl2 = _pad_rows((h1 @ params["w2l"]).astype(jnp.bfloat16), n_col_pad)
    xwr2 = _pad_rows((h1 @ params["w2r"]).astype(jnp.float32), n_row_pad)
    out = _sage_layer(a_counts, xwl2, xwr2, inv_deg, b2, apply_relu=False,
                      out_dtype=jnp.float32, tm=tm_e, tk=tk_e)[:n]
    return out


def _reference_forward(x, edge_index, params):
    """Pure-JAX f32 reference of the same semantics (correctness check)."""
    n = x.shape[0]
    src, dst = edge_index[0], edge_index[1]
    a = jnp.zeros((n, n), jnp.float32).at[dst, src].add(1.0)
    a = a / jnp.maximum(jnp.sum(a, axis=1, keepdims=True), 1.0)
    h = a @ x @ params["w1l"] + x @ params["w1r"] + params["b1"]
    h = jnp.maximum(h, 0.0)
    return a @ h @ params["w2l"] + h @ params["w2r"] + params["b2"]


if __name__ == "__main__":
    # Small but non-trivial: N=200 pads to 256, so the "parallel" row axis still splits into
    # 2 tiles (both v7x TensorCores busy) even with the default large-tile configuration.
    N, F_IN, HIDDEN, E = 200, 16, 32, 600

    key = jax.random.PRNGKey(0)
    k_x, k_src, k_dst, k1, k2, k3, k4, k5, k6 = jax.random.split(key, 9)

    x = jax.random.normal(k_x, (N, F_IN), dtype=jnp.float32)
    edge_index = jnp.stack([
        jax.random.randint(k_src, (E,), 0, N, dtype=jnp.int32),
        jax.random.randint(k_dst, (E,), 0, N, dtype=jnp.int32),
    ], axis=0)

    # SAGEConv((-1,-1), 32) twice: lazy in-dims resolve to F_IN (conv1) / HIDDEN (conv2).
    # Weights stored pre-transposed as [in, out]; bias belongs to lin_l (PyG default).
    params = {
        "w1l": 0.1 * jax.random.normal(k1, (F_IN, HIDDEN), dtype=jnp.float32),
        "w1r": 0.1 * jax.random.normal(k2, (F_IN, HIDDEN), dtype=jnp.float32),
        "b1": 0.1 * jax.random.normal(k5, (1, HIDDEN), dtype=jnp.float32),
        "w2l": 0.1 * jax.random.normal(k3, (HIDDEN, HIDDEN), dtype=jnp.float32),
        "w2r": 0.1 * jax.random.normal(k4, (HIDDEN, HIDDEN), dtype=jnp.float32),
        "b2": 0.1 * jax.random.normal(k6, (1, HIDDEN), dtype=jnp.float32),
    }

    ref = _reference_forward(x, edge_index, params)

    # Default (performant) tile configuration.
    out = graph_sage_forward(x, edge_index, params)
    out = jax.block_until_ready(out)
    assert out.shape == (N, HIDDEN)
    # bf16 contraction operands (f32 accumulation, exact int8 counts + f32 1/deg) -> the
    # tolerance vs the f32 reference is comfortably met.
    assert jnp.allclose(out, ref, atol=5e-2, rtol=5e-2), (
        float(jnp.max(jnp.abs(out - ref))))

    # Small tiles purely for coverage of the multi-step contraction (k) accumulation path
    # (grid = (2, 2) here) -- NOT a performance configuration.
    out_small = graph_sage_forward(x, edge_index, params, tm=128, tk=128)
    out_small = jax.block_until_ready(out_small)
    assert jnp.allclose(out_small, ref, atol=5e-2, rtol=5e-2), (
        float(jnp.max(jnp.abs(out_small - ref))))

    print("KERNEL_OK")
</pallas_src>

<mosaic_0001>
module attributes {stable_mosaic.version = 11 : i64} {
  func.func @_sage_layer_kernel(%arg0: i32, %arg1: i32, %arg2: memref<128x256xi8, #tpu.memory_space<vmem>>, %arg3: memref<256x32xbf16, #tpu.memory_space<vmem>>, %arg4: memref<128x32xf32, #tpu.memory_space<vmem>>, %arg5: memref<128x1xf32, #tpu.memory_space<vmem>>, %arg6: memref<1x32xf32, #tpu.memory_space<vmem>>, %arg7: memref<128x32xbf16, #tpu.memory_space<vmem>>, %arg8: memref<128x32xf32, #tpu.memory_space<vmem>>) attributes {dimension_semantics = [#tpu.dimension_semantics<parallel>, #tpu.dimension_semantics<arbitrary>], iteration_bounds = array<i64: 2, 1>, scalar_prefetch = 0 : i64, scratch_operands = 1 : i64, tpu.core_type = #tpu.core_type<tc>, window_params = [{transform_indices = @transform_0, window_bounds = array<i64: 128, 256>}, {transform_indices = @transform_1, window_bounds = array<i64: 256, 32>}, {transform_indices = @transform_2, window_bounds = array<i64: 128, 32>}, {transform_indices = @transform_3, window_bounds = array<i64: 128, 1>}, {pipeline_mode = #tpu.pipeline_mode<synchronous>, transform_indices = @transform_4, window_bounds = array<i64: 1, 32>}, {transform_indices = @transform_5, window_bounds = array<i64: 128, 32>}]} {
    %c0_i32 = arith.constant 0 : i32
    %0 = arith.cmpi eq, %arg1, %c0_i32 : i32
    %1 = arith.extui %0 : i1 to i32
    %c0_i32_0 = arith.constant 0 : i32
    %2 = arith.cmpi ne, %1, %c0_i32_0 : i32
    scf.if %2 {
      %cst_10 = arith.constant 0.000000e+00 : f32
      %13 = vector.broadcast %cst_10 : f32 to vector<128x32xf32>
      %c0_11 = arith.constant 0 : index
      %c0_12 = arith.constant 0 : index
      %14 = vector.load %arg8[%c0_11, %c0_12] : memref<128x32xf32, #tpu.memory_space<vmem>>, vector<128x32xf32>
      tpu.vector_store %arg8[%c0_11, %c0_12], %13 {strides = array<i32>} : memref<128x32xf32, #tpu.memory_space<vmem>>, vector<128x32xf32>,
    } else {
    }
    %c0 = arith.constant 0 : index
    %c0_1 = arith.constant 0 : index
    %3 = vector.load %arg2[%c0, %c0_1] : memref<128x256xi8, #tpu.memory_space<vmem>>, vector<128x256xi8>
    %4 = arith.sitofp %3 : vector<128x256xi8> to vector<128x256xbf16>
    %c0_2 = arith.constant 0 : index
    %c0_3 = arith.constant 0 : index
    %5 = vector.load %arg8[%c0_2, %c0_3] : memref<128x32xf32, #tpu.memory_space<vmem>>, vector<128x32xf32>
    %c0_4 = arith.constant 0 : index
    %c0_5 = arith.constant 0 : index
    %6 = vector.load %arg3[%c0_4, %c0_5] : memref<256x32xbf16, #tpu.memory_space<vmem>>, vector<256x32xbf16>
    %cst = arith.constant dense<0.000000e+00> : vector<128x32xf32>
    %7 = tpu.matmul %4, %6, %cst {dimension_numbers = #tpu.dot_dimension_numbers<[1], [0], [0], [1], [0, 0, 1, 1], [], []>} : vector<128x256xbf16>, vector<256x32xbf16>, vector<128x32xf32> -> vector<128x32xf32>
    %8 = arith.addf %5, %7 : vector<128x32xf32>
    %c0_6 = arith.constant 0 : index
    %c0_7 = arith.constant 0 : index
    %9 = vector.load %arg8[%c0_6, %c0_7] : memref<128x32xf32, #tpu.memory_space<vmem>>, vector<128x32xf32>
    tpu.vector_store %arg8[%c0_6, %c0_7], %8 {strides = array<i32>} : memref<128x32xf32, #tpu.memory_space<vmem>>, vector<128x32xf32>,
    %c0_i32_8 = arith.constant 0 : i32
    %10 = arith.cmpi eq, %arg1, %c0_i32_8 : i32
    %11 = arith.extui %10 : i1 to i32
    %c0_i32_9 = arith.constant 0 : i32
    %12 = arith.cmpi ne, %11, %c0_i32_9 : i32
    scf.if %12 {
      %c0_10 = arith.constant 0 : index
      %c0_11 = arith.constant 0 : index
      %13 = vector.load %arg8[%c0_10, %c0_11] : memref<128x32xf32, #tpu.memory_space<vmem>>, vector<128x32xf32>
      %c0_12 = arith.constant 0 : index
      %c0_13 = arith.constant 0 : index
      %14 = vector.load %arg5[%c0_12, %c0_13] : memref<128x1xf32, #tpu.memory_space<vmem>>, vector<128x1xf32>
      %15 = vector.broadcast %14 : vector<128x1xf32> to vector<128x32xf32>
      %16 = arith.mulf %13, %15 : vector<128x32xf32>
      %c0_14 = arith.constant 0 : index
      %c0_15 = arith.constant 0 : index
      %17 = vector.load %arg4[%c0_14, %c0_15] : memref<128x32xf32, #tpu.memory_space<vmem>>, vector<128x32xf32>
      %18 = arith.addf %16, %17 : vector<128x32xf32>
      %c0_16 = arith.constant 0 : index
      %c0_17 = arith.constant 0 : index
      %19 = vector.load %arg6[%c0_16, %c0_17] : memref<1x32xf32, #tpu.memory_space<vmem>>, vector<1x32xf32>
      %20 = vector.broadcast %19 : vector<1x32xf32> to vector<128x32xf32>
      %21 = arith.addf %18, %20 : vector<128x32xf32>
      %cst_18 = arith.constant 0.000000e+00 : f32
      %22 = vector.broadcast %cst_18 : f32 to vector<128x32xf32>
      %23 = arith.maximumf %21, %22 : vector<128x32xf32>
      %24 = arith.truncf %23 : vector<128x32xf32> to vector<128x32xbf16>
      %c0_19 = arith.constant 0 : index
      %c0_20 = arith.constant 0 : index
      %25 = vector.load %arg7[%c0_19, %c0_20] : memref<128x32xbf16, #tpu.memory_space<vmem>>, vector<128x32xbf16>
      tpu.vector_store %arg7[%c0_19, %c0_20], %24 {strides = array<i32>} : memref<128x32xbf16, #tpu.memory_space<vmem>>, vector<128x32xbf16>,
    } else {
    }
    return
  }
  func.func @transform_0(%arg0: i32, %arg1: i32) -> (i32, i32) {
    %c0_i32 = arith.constant 0 : i32
    return %arg0, %arg1 : i32, i32
  }
  func.func @transform_1(%arg0: i32, %arg1: i32) -> (i32, i32) {
    %c0_i32 = arith.constant 0 : i32
    %c0_i32_0 = arith.constant 0 : i32
    return %arg1, %c0_i32 : i32, i32
  }
  func.func @transform_2(%arg0: i32, %arg1: i32) -> (i32, i32) {
    %c0_i32 = arith.constant 0 : i32
    %c0_i32_0 = arith.constant 0 : i32
    return %arg0, %c0_i32 : i32, i32
  }
  func.func @transform_3(%arg0: i32, %arg1: i32) -> (i32, i32) {
    %c0_i32 = arith.constant 0 : i32
    %c0_i32_0 = arith.constant 0 : i32
    return %arg0, %c0_i32 : i32, i32
  }
  func.func @transform_4(%arg0: i32, %arg1: i32) -> (i32, i32) {
    %c0_i32 = arith.constant 0 : i32
    %c0_i32_0 = arith.constant 0 : i32
    %c0_i32_1 = arith.constant 0 : i32
    return %c0_i32, %c0_i32_0 : i32, i32
  }
  func.func @transform_5(%arg0: i32, %arg1: i32) -> (i32, i32) {
    %c0_i32 = arith.constant 0 : i32
    %c0_i32_0 = arith.constant 0 : i32
    return %arg0, %c0_i32 : i32, i32
  }
}

</mosaic_0001>

<llo_original>
// kernel: tpu_custom_call.1
$region0: #{tpu_custom_call.1}
  #allocation0 [shape = 'u32[]', space=smem, size = 0x4, offset = 0x4, fixed_abs, tag = 'smem constant byte address 0x4 - core index']
  #allocation1 [shape = 'u32[144,128]{1,0:T(1,128)}', space=vmem, size = 0x12000, scoped, tag = 'internal scratch']
  #allocation2 [shape = 'f32[128,32]{1,0:T(8,128)}', space=vmem, size = 0x10000, scoped, tag = 'scratch operand']
  %s0 = inlined_call_operand.vmem [shape: s8[256,256], index: 0, kind: input, shape index: {}]
  %s1 = inlined_call_operand.vmem [shape: bf16[256,32], index: 1, kind: input, shape index: {}]
  %s2 = inlined_call_operand.vmem [shape: f32[256,32], index: 2, kind: input, shape index: {}]
  %s3 = inlined_call_operand.vmem [shape: f32[256,1], index: 3, kind: input, shape index: {}]
  %s4 = inlined_call_operand.vmem [shape: f32[1,32], index: 4, kind: input, shape index: {}]
  %s5 = inlined_call_operand.vmem [shape: bf16[256,32], index: 5, kind: output, shape index: {}]
  %s6 = sld [smem:[#allocation0]]
  $region61: #{tpu_custom_call.1} parent=0
    _
  %s8 = ssub.s32 1, %s6
  %s9 = scalar_select 0, %s8, %s6
  loop: start=0, step=1, limit=4
  $region2: #{tpu_custom_call.1} parent=0 // loop_pre_header
    _
  $region3: #{tpu_custom_call.1} parent=0 // loop_header
    %s11 = sphi 0, %s15
    %p12 = scmp.ge.s32.totalorder %s11, 4
    %s18 = sphi 0, %s30
    %s19 = sphi 0, %s26
    %s20 = sphi 0, %s18
    %s21 = sphi 0, %s19
    %s22 = sphi 0, %s20
    %s23 = sphi 0, %s21
    %s35 = sphi 0, %s37
    %s38 = sphi 0, %s35
    %s39 = sphi 0, %s38
    %s55 = sphi 0, %s39
    %s61 = sphi 0, %s63
    %s64 = sphi 0, %s61
    %s65 = sphi 0, %s64
    %s81 = sphi 0, %s65
    %s87 = sphi 0, %s89
    %s90 = sphi 0, %s87
    %s91 = sphi 0, %s90
    %s107 = sphi 0, %s91
    %s113 = sphi 0, %s115
    %s116 = sphi 0, %s113
    %s117 = sphi 0, %s116
    %s133 = sphi 0, %s117
    %s137 = sphi 0, %s137
    %s139 = sphi 0, %s137
    %s140 = sphi 0, %s139
    %s154 = sphi 0, %s140
    %s160 = sphi 0, %s162
    %s163 = sphi 0, %s160
    %s164 = sphi 0, %s163
    %s180 = sphi 0, %s164
  $region4: #{tpu_custom_call.1} parent=0 // loop_header_branch
    %14 = sbr.rel (%p12) target = $region8
  $region5: #{tpu_custom_call.1} parent=0 // loop_body
    %s16 = ssub.s32 %s11, 1
    %s17 = ssub.s32 %s11, 2
    %s24 = sadd.s32 1, %s19
    %p25 = scmp.ge.s32.totalorder %s24, 1
    %s26 = scalar_select %p25, 0, %s24
    %s27 = sadd.s32 1, %s18
    %s28 = scalar_select %p25, %s27, %s18
    %p29 = scmp.ge.s32.totalorder %s28, 2
    %s30 = scalar_select %p29, 0, %s28
    %s31 = ssub.s32 %s18, %s30
    %s32 = ssub.s32 %s19, %s26
    %s33 = sor.u32 %s31, %s32
    %p34 = scmp.eq.s32.totalorder %s33, 0
    %s36 = sadd.s32 %s35, 1
    %s37 = scalar_select %p34, %s35, %s36
    %p40 = pneg %p34
    %p41 = scmp.eq.s32.totalorder %s11, 1
    %p42 = por %p40, %p41
    %p43 = scmp.ne.s32.totalorder %s35, %s38
    %p44 = scmp.eq.s32.totalorder %s11, 0
    %p45 = por %p43, %p44
    %p46 = scmp.ne.s32.totalorder %s35, %s38
    %p47 = scmp.eq.s32.totalorder %s16, 1
    %p48 = por %p46, %p47
    %p49 = scmp.ne.s32.totalorder %s38, %s39
    %p50 = scmp.eq.s32.totalorder %s16, 0
    %p51 = por %p49, %p50
    %p52 = scmp.ne.s32.totalorder %s38, %s39
    %p53 = scmp.eq.s32.totalorder %s17, 1
    %p54 = por %p52, %p53
    %p56 = scmp.ne.s32.totalorder %s39, %s55
    %p57 = scmp.eq.s32.totalorder %s17, 0
    %p58 = por %p56, %p57
    %s59 = ssub.s32 %s19, %s26
    %p60 = scmp.eq.s32.totalorder %s59, 0
    %s62 = sadd.s32 %s61, 1
    %s63 = scalar_select %p60, %s61, %s62
    %p66 = pneg %p60
    %p67 = scmp.eq.s32.totalorder %s11, 1
    %p68 = por %p66, %p67
    %p69 = scmp.ne.s32.totalorder %s61, %s64
    %p70 = scmp.eq.s32.totalorder %s11, 0
    %p71 = por %p69, %p70
    %p72 = scmp.ne.s32.totalorder %s61, %s64
    %p73 = scmp.eq.s32.totalorder %s16, 1
    %p74 = por %p72, %p73
    %p75 = scmp.ne.s32.totalorder %s64, %s65
    %p76 = scmp.eq.s32.totalorder %s16, 0
    %p77 = por %p75, %p76
    %p78 = scmp.ne.s32.totalorder %s64, %s65
    %p79 = scmp.eq.s32.totalorder %s17, 1
    %p80 = por %p78, %p79
    %p82 = scmp.ne.s32.totalorder %s65, %s81
    %p83 = scmp.eq.s32.totalorder %s17, 0
    %p84 = por %p82, %p83
    %s85 = ssub.s32 %s18, %s30
    %p86 = scmp.eq.s32.totalorder %s85, 0
    %s88 = sadd.s32 %s87, 1
    %s89 = scalar_select %p86, %s87, %s88
    %p92 = pneg %p86
    %p93 = scmp.eq.s32.totalorder %s11, 1
    %p94 = por %p92, %p93
    %p95 = scmp.ne.s32.totalorder %s87, %s90
    %p96 = scmp.eq.s32.totalorder %s11, 0
    %p97 = por %p95, %p96
    %p98 = scmp.ne.s32.totalorder %s87, %s90
    %p99 = scmp.eq.s32.totalorder %s16, 1
    %p100 = por %p98, %p99
    %p101 = scmp.ne.s32.totalorder %s90, %s91
    %p102 = scmp.eq.s32.totalorder %s16, 0
    %p103 = por %p101, %p102
    %p104 = scmp.ne.s32.totalorder %s90, %s91
    %p105 = scmp.eq.s32.totalorder %s17, 1
    %p106 = por %p104, %p105
    %p108 = scmp.ne.s32.totalorder %s91, %s107
    %p109 = scmp.eq.s32.totalorder %s17, 0
    %p110 = por %p108, %p109
    %s111 = ssub.s32 %s18, %s30
    %p112 = scmp.eq.s32.totalorder %s111, 0
    %s114 = sadd.s32 %s113, 1
    %s115 = scalar_select %p112, %s113, %s114
    %p118 = pneg %p112
    %p119 = scmp.eq.s32.totalorder %s11, 1
    %p120 = por %p118, %p119
    %p121 = scmp.ne.s32.totalorder %s113, %s116
    %p122 = scmp.eq.s32.totalorder %s11, 0
    %p123 = por %p121, %p122
    %p124 = scmp.ne.s32.totalorder %s113, %s116
    %p125 = scmp.eq.s32.totalorder %s16, 1
    %p126 = por %p124, %p125
    %p127 = scmp.ne.s32.totalorder %s116, %s117
    %p128 = scmp.eq.s32.totalorder %s16, 0
    %p129 = por %p127, %p128
    %p130 = scmp.ne.s32.totalorder %s116, %s117
    %p131 = scmp.eq.s32.totalorder %s17, 1
    %p132 = por %p130, %p131
    %p134 = scmp.ne.s32.totalorder %s117, %s133
    %p135 = scmp.eq.s32.totalorder %s17, 0
    %p136 = por %p134, %p135
    %s138 = sadd.s32 %s137, 1
    %p141 = scmp.eq.s32.totalorder %s11, 1
    %p142 = scmp.ne.s32.totalorder %s137, %s139
    %p143 = scmp.eq.s32.totalorder %s11, 0
    %p144 = por %p142, %p143
    %p145 = scmp.ne.s32.totalorder %s137, %s139
    %p146 = scmp.eq.s32.totalorder %s16, 1
    %p147 = por %p145, %p146
    %p148 = scmp.ne.s32.totalorder %s139, %s140
    %p149 = scmp.eq.s32.totalorder %s16, 0
    %p150 = por %p148, %p149
    %p151 = scmp.ne.s32.totalorder %s139, %s140
    %p152 = scmp.eq.s32.totalorder %s17, 1
    %p153 = por %p151, %p152
    %p155 = scmp.ne.s32.totalorder %s140, %s154
    %p156 = scmp.eq.s32.totalorder %s17, 0
    %p157 = por %p155, %p156
    %s158 = ssub.s32 %s18, %s30
    %p159 = scmp.eq.s32.totalorder %s158, 0
    %s161 = sadd.s32 %s160, 1
    %s162 = scalar_select %p159, %s160, %s161
    %p165 = pneg %p159
    %p166 = scmp.eq.s32.totalorder %s11, 1
    %p167 = por %p165, %p166
    %p168 = scmp.ne.s32.totalorder %s160, %s163
    %p169 = scmp.eq.s32.totalorder %s11, 0
    %p170 = por %p168, %p169
    %p171 = scmp.ne.s32.totalorder %s160, %s163
    %p172 = scmp.eq.s32.totalorder %s16, 1
    %p173 = por %p171, %p172
    %p174 = scmp.ne.s32.totalorder %s163, %s164
    %p175 = scmp.eq.s32.totalorder %s16, 0
    %p176 = por %p174, %p175
    %p177 = scmp.ne.s32.totalorder %s163, %s164
    %p178 = scmp.eq.s32.totalorder %s17, 1
    %p179 = por %p177, %p178
    %p181 = scmp.ne.s32.totalorder %s164, %s180
    %p182 = scmp.eq.s32.totalorder %s17, 0
    %p183 = por %p181, %p182
    %p184 = scmp.le.s32.totalorder 1, %s11
    %p185 = scmp.lt.s32.totalorder %s11, 3
    %p186 = pnand %p184, %p185
    %p187 = pneg %p186
    // Predicated region
    $region9: #{tpu_custom_call.1} parent=5 // pred_check
      _
    $region10: #{tpu_custom_call.1} parent=5 // pred_check_branch
      %189 = sbr.rel (%p186) target = $region12
    $region11: #{tpu_custom_call.1} parent=5 // pred_region
      %s190 = ssub.s32 %s11, 1
      // Predicated region
      $region13: #{tpu_custom_call.1} parent=11 // pred_check
        %p191 = pneg %p77
      $region14: #{tpu_custom_call.1} parent=11 // pred_check_branch
        %193 = sbr.rel (%p191) target = $region16
      $region15: #{tpu_custom_call.1} parent=11 // pred_region
        %s194 = smul.u32 32, %s21
        %p195 = scmp.lt.s32.totalorder %s194, 31
        %s196 = scalar_select %p195, %s194, 31
        %s197 = smul.addr %s196, 4
        %s198 = scalar_lea.vmem %s1, %s197
        %s199 = smul.u32 32, %s21
      $region16: #{tpu_custom_call.1} parent=11 // pred_fallthru
        _
      // Predicated region
      $region17: #{tpu_custom_call.1} parent=11 // pred_check
        %p200 = pneg %p150
      $region18: #{tpu_custom_call.1} parent=11 // pred_check_branch
        %202 = sbr.rel (%p200) target = $region20
      $region19: #{tpu_custom_call.1} parent=11 // pred_region
        _
      $region20: #{tpu_custom_call.1} parent=11 // pred_fallthru
        _
    $region12: #{tpu_custom_call.1} parent=5 // pred_fallthru
      _
    %p203 = scmp.lt.s32.totalorder %s11, 2
    // Predicated region
    $region21: #{tpu_custom_call.1} parent=5 // pred_check
      %p204 = pneg %p203
    $region22: #{tpu_custom_call.1} parent=5 // pred_check_branch
      %206 = sbr.rel (%p204) target = $region24
    $region23: #{tpu_custom_call.1} parent=5 // pred_region
      // Predicated region
      $region25: #{tpu_custom_call.1} parent=23 // pred_check
        %p207 = pneg %p45
      $region26: #{tpu_custom_call.1} parent=23 // pred_check_branch
        %209 = sbr.rel (%p207) target = $region28
      $region27: #{tpu_custom_call.1} parent=23 // pred_region
        %s210 = smul.u32 4, %s18
        %s211 = smul.u32 2, %s19
        %p212 = scmp.lt.s32.totalorder %s210, 7
        %s213 = scalar_select %p212, %s210, 7
        %p214 = scmp.lt.s32.totalorder %s211, 1
        %s215 = scalar_select %p214, %s211, 1
        %s216 = smul.addr %s213, 2
        %s217 = sadd.s32 %s215, %s216
        %s218 = smul.addr %s217, 8
        %s219 = scalar_lea.vmem %s0, %s218
        %s220 = smul.u32 4, %s18
        %s221 = smul.u32 2, %s19
      $region28: #{tpu_custom_call.1} parent=23 // pred_fallthru
        _
      // Predicated region
      $region29: #{tpu_custom_call.1} parent=23 // pred_check
        %p222 = pneg %p97
      $region30: #{tpu_custom_call.1} parent=23 // pred_check_branch
        %224 = sbr.rel (%p222) target = $region32
      $region31: #{tpu_custom_call.1} parent=23 // pred_region
        %s225 = smul.u32 16, %s18
        %p226 = scmp.lt.s32.totalorder %s225, 31
        %s227 = scalar_select %p226, %s225, 31
        %s228 = smul.addr %s227, 8
        %s229 = scalar_lea.vmem %s2, %s228
        %s230 = smul.u32 16, %s18
      $region32: #{tpu_custom_call.1} parent=23 // pred_fallthru
        _
      // Predicated region
      $region33: #{tpu_custom_call.1} parent=23 // pred_check
        %p231 = pneg %p123
      $region34: #{tpu_custom_call.1} parent=23 // pred_check_branch
        %233 = sbr.rel (%p231) target = $region36
      $region35: #{tpu_custom_call.1} parent=23 // pred_region
        %s234 = smul.u32 16, %s18
        %p235 = scmp.lt.s32.totalorder %s234, 31
        %s236 = scalar_select %p235, %s234, 31
        %s237 = smul.addr %s236, 8
        %s238 = scalar_lea.vmem %s3, %s237
        %s239 = smul.u32 16, %s18
      $region36: #{tpu_custom_call.1} parent=23 // pred_fallthru
        _
    $region24: #{tpu_custom_call.1} parent=5 // pred_fallthru
      _
    %p240 = scmp.le.s32.totalorder 1, %s11
    %p241 = scmp.lt.s32.totalorder %s11, 3
    %p242 = pnand %p240, %p241
    %p243 = pneg %p242
    // Predicated region
    $region37: #{tpu_custom_call.1} parent=5 // pred_check
      _
    $region38: #{tpu_custom_call.1} parent=5 // pred_check_branch
      %245 = sbr.rel (%p242) target = $region40
    $region39: #{tpu_custom_call.1} parent=5 // pred_region
      %s246 = ssub.s32 %s11, 1
      %s247 = smul.u32 4, %s20
      %s248 = smul.u32 2, %s21
      %p249 = scmp.lt.s32.totalorder %s247, 7
      %s250 = scalar_select %p249, %s247, 7
      %p251 = scmp.lt.s32.totalorder %s248, 1
      %s252 = scalar_select %p251, %s248, 1
      %s253 = smul.addr %s250, 2
      %s254 = sadd.s32 %s252, %s253
      %s255 = smul.addr %s254, 8
      %s256 = scalar_lea.vmem %s0, %s255
      %p257 = pneg %p51
      %p258 = pneg %p48
      %s259 = smul.u32 32, %s21
      %p260 = scmp.lt.s32.totalorder %s259, 31
      %s261 = scalar_select %p260, %s259, 31
      %s262 = smul.addr %s261, 4
      %s263 = scalar_lea.vmem %s1, %s262
      %p264 = pneg %p77
      %p265 = pneg %p74
      %s266 = smul.u32 16, %s20
      %p267 = scmp.lt.s32.totalorder %s266, 31
      %s268 = scalar_select %p267, %s266, 31
      %s269 = smul.addr %s268, 8
      %s270 = scalar_lea.vmem %s2, %s269
      %p271 = pneg %p103
      %p272 = pneg %p100
      %s273 = smul.u32 16, %s20
      %p274 = scmp.lt.s32.totalorder %s273, 31
      %s275 = scalar_select %p274, %s273, 31
      %s276 = smul.addr %s275, 8
      %s277 = scalar_lea.vmem %s3, %s276
      %p278 = pneg %p129
      %p279 = pneg %p126
      %p280 = pneg %p150
      %p281 = pneg %p147
      %p282 = pneg %p176
      %p283 = pneg %p173
      %s284 = smul.u32 16, %s20
      %p285 = scmp.lt.s32.totalorder %s284, 31
      %s286 = scalar_select %p285, %s284, 31
      %s287 = smul.addr %s286, 4
      %s288 = scalar_lea.vmem %s5, %s287
      %s289 = smul.u32 4, %s20
      %s290 = smul.u32 2, %s21
      %p291 = scmp.lt.s32.totalorder %s289, 7
      %s292 = scalar_select %p291, %s289, 7
      %p293 = scmp.lt.s32.totalorder %s290, 1
      %s294 = scalar_select %p293, %s290, 1
      %s295 = smul.addr %s292, 2
      %s296 = sadd.s32 %s294, %s295
      %s297 = smul.addr %s296, 8
      %s298 = scalar_lea.vmem %s0, %s297
      %s299 = smul.u32 4, %s20
      %s300 = smul.u32 2, %s21
      %s301 = smul.u32 32, %s21
      %p302 = scmp.lt.s32.totalorder %s301, 31
      %s303 = scalar_select %p302, %s301, 31
      %s304 = smul.addr %s303, 4
      %s305 = scalar_lea.vmem %s1, %s304
      %s306 = smul.u32 32, %s21
      %s307 = smul.u32 16, %s20
      %p308 = scmp.lt.s32.totalorder %s307, 31
      %s309 = scalar_select %p308, %s307, 31
      %s310 = smul.addr %s309, 8
      %s311 = scalar_lea.vmem %s2, %s310
      %s312 = smul.u32 16, %s20
      %s313 = smul.u32 16, %s20
      %p314 = scmp.lt.s32.totalorder %s313, 31
      %s315 = scalar_select %p314, %s313, 31
      %s316 = smul.addr %s315, 8
      %s317 = scalar_lea.vmem %s3, %s316
      %s318 = smul.u32 16, %s20
      %s319 = smul.u32 16, %s20
      %p320 = scmp.lt.s32.totalorder %s319, 31
      %s321 = scalar_select %p320, %s319, 31
      %s322 = smul.addr %s321, 4
      %s323 = scalar_lea.vmem %s5, %s322
      %s324 = smul.u32 16, %s20
      %p326 = scmp.eq.s32.totalorder %s21, 0
      // Predicated region
      $region41: #{tpu_custom_call.1} parent=39 // pred_check
        %p327 = pneg %p326
      $region42: #{tpu_custom_call.1} parent=39 // pred_check_branch
        %329 = sbr.rel (%p327) target = $region44
      $region43: #{tpu_custom_call.1} parent=39 // pred_region
        %vm330 = vcmask 261120
        %331 = vst.msk [vmem:[#allocation2] sm:$0xff] %vm330, 0.0
        %332 = vst.msk [vmem:[#allocation2 + $0x8] sm:$0xff] %vm330, 0.0
        %333 = vst.msk [vmem:[#allocation2 + $0x10] sm:$0xff] %vm330, 0.0
        %334 = vst.msk [vmem:[#allocation2 + $0x18] sm:$0xff] %vm330, 0.0
        %335 = vst.msk [vmem:[#allocation2 + $0x20] sm:$0xff] %vm330, 0.0
        %336 = vst.msk [vmem:[#allocation2 + $0x28] sm:$0xff] %vm330, 0.0
        %337 = vst.msk [vmem:[#allocation2 + $0x30] sm:$0xff] %vm330, 0.0
        %338 = vst.msk [vmem:[#allocation2 + $0x38] sm:$0xff] %vm330, 0.0
        %339 = vst.msk [vmem:[#allocation2 + $0x40] sm:$0xff] %vm330, 0.0
        %340 = vst.msk [vmem:[#allocation2 + $0x48] sm:$0xff] %vm330, 0.0
        %341 = vst.msk [vmem:[#allocation2 + $0x50] sm:$0xff] %vm330, 0.0
        %342 = vst.msk [vmem:[#allocation2 + $0x58] sm:$0xff] %vm330, 0.0
        %343 = vst.msk [vmem:[#allocation2 + $0x60] sm:$0xff] %vm330, 0.0
        %344 = vst.msk [vmem:[#allocation2 + $0x68] sm:$0xff] %vm330, 0.0
        %345 = vst.msk [vmem:[#allocation2 + $0x70] sm:$0xff] %vm330, 0.0
        %346 = vst.msk [vmem:[#allocation2 + $0x78] sm:$0xff] %vm330, 0.0
      $region44: #{tpu_custom_call.1} parent=39 // pred_fallthru
        _
      %v347 = vld [vmem:[%s298] sm:$0xff]
      %v348 = vld [vmem:[%s298 + $0x8] sm:$0xff]
      %v349 = vld [vmem:[%s298 + $0x10] sm:$0xff]
      %v350 = vld [vmem:[%s298 + $0x18] sm:$0xff]
      %v351 = vld [vmem:[%s298 + $0x20] sm:$0xff]
      %v352 = vld [vmem:[%s298 + $0x28] sm:$0xff]
      %v353 = vld [vmem:[%s298 + $0x30] sm:$0xff]
      %v354 = vld [vmem:[%s298 + $0x38] sm:$0xff]
      %v355 = vunpack.c.l.s8.bf16 %v347
      %v356 = vunpack.c.l.s8.bf16 %v348
      %v357 = vunpack.c.h.s8.bf16 %v347
      %v358 = vunpack.c.h.s8.bf16 %v348
      %v359 = vunpack.c.l.s8.bf16 %v349
      %v360 = vunpack.c.l.s8.bf16 %v350
      %v361 = vunpack.c.h.s8.bf16 %v349
      %v362 = vunpack.c.h.s8.bf16 %v350
      %v363 = vunpack.c.l.s8.bf16 %v351
      %v364 = vunpack.c.l.s8.bf16 %v352
      %v365 = vunpack.c.h.s8.bf16 %v351
      %v366 = vunpack.c.h.s8.bf16 %v352
      %v367 = vunpack.c.l.s8.bf16 %v353
      %v368 = vunpack.c.l.s8.bf16 %v354
      %v369 = vunpack.c.h.s8.bf16 %v353
      %v370 = vunpack.c.h.s8.bf16 %v354
      %v371 = vld [vmem:[#allocation2] sm:$0xff]
      %v372 = vld [vmem:[#allocation2 + $0x8] sm:$0xff]
      %v373 = vld [vmem:[#allocation2 + $0x10] sm:$0xff]
      %v374 = vld [vmem:[#allocation2 + $0x18] sm:$0xff]
      %v375 = vld [vmem:[#allocation2 + $0x20] sm:$0xff]
      %v376 = vld [vmem:[#allocation2 + $0x28] sm:$0xff]
      %v377 = vld [vmem:[#allocation2 + $0x30] sm:$0xff]
      %v378 = vld [vmem:[#allocation2 + $0x38] sm:$0xff]
      %v379 = vld [vmem:[#allocation2 + $0x40] sm:$0xff]
      %v380 = vld [vmem:[#allocation2 + $0x48] sm:$0xff]
      %v381 = vld [vmem:[#allocation2 + $0x50] sm:$0xff]
      %v382 = vld [vmem:[#allocation2 + $0x58] sm:$0xff]
      %v383 = vld [vmem:[#allocation2 + $0x60] sm:$0xff]
      %v384 = vld [vmem:[#allocation2 + $0x68] sm:$0xff]
      %v385 = vld [vmem:[#allocation2 + $0x70] sm:$0xff]
      %v386 = vld [vmem:[#allocation2 + $0x78] sm:$0xff]
      %v387 = vld [vmem:[%s305] sm:$0xf]
      %v388 = vld [vmem:[%s305 + $0x4] sm:$0xf]
      %v389 = vld [vmem:[%s305 + $0x8] sm:$0xf]
      %v390 = vld [vmem:[%s305 + $0xc] sm:$0xf]
      %v391 = vld [vmem:[%s305 + $0x10] sm:$0xf]
      %v392 = vld [vmem:[%s305 + $0x14] sm:$0xf]
      %v393 = vld [vmem:[%s305 + $0x18] sm:$0xf]
      %v394 = vld [vmem:[%s305 + $0x1c] sm:$0xf]
      %v395 = vld [vmem:[%s305 + $0x20] sm:$0xf]
      %v396 = vld [vmem:[%s305 + $0x24] sm:$0xf]
      %v397 = vld [vmem:[%s305 + $0x28] sm:$0xf]
      %v398 = vld [vmem:[%s305 + $0x2c] sm:$0xf]
      %v399 = vld [vmem:[%s305 + $0x30] sm:$0xf]
      %v400 = vld [vmem:[%s305 + $0x34] sm:$0xf]
      %v401 = vld [vmem:[%s305 + $0x38] sm:$0xf]
      %v402 = vld [vmem:[%s305 + $0x3c] sm:$0xf]
      %v403 = vld [vmem:[%s305 + $0x40] sm:$0xf]
      %v404 = vld [vmem:[%s305 + $0x44] sm:$0xf]
      %v405 = vld [vmem:[%s305 + $0x48] sm:$0xf]
      %v406 = vld [vmem:[%s305 + $0x4c] sm:$0xf]
      %v407 = vld [vmem:[%s305 + $0x50] sm:$0xf]
      %v408 = vld [vmem:[%s305 + $0x54] sm:$0xf]
      %v409 = vld [vmem:[%s305 + $0x58] sm:$0xf]
      %v410 = vld [vmem:[%s305 + $0x5c] sm:$0xf]
      %v411 = vld [vmem:[%s305 + $0x60] sm:$0xf]
      %v412 = vld [vmem:[%s305 + $0x64] sm:$0xf]
      %v413 = vld [vmem:[%s305 + $0x68] sm:$0xf]
      %v414 = vld [vmem:[%s305 + $0x6c] sm:$0xf]
      %v415 = vld [vmem:[%s305 + $0x70] sm:$0xf]
      %v416 = vld [vmem:[%s305 + $0x74] sm:$0xf]
      %v417 = vld [vmem:[%s305 + $0x78] sm:$0xf]
      %v418 = vld [vmem:[%s305 + $0x7c] sm:$0xf]
      %v451 = vunpack.c.l.b16 %v387
      %v452 = vunpack.c.l.b16 %v388
      %v453 = vunpack.c.l.b16 %v389
      %v454 = vunpack.c.l.b16 %v390
      %v455 = vunpack.c.l.b16 %v391
      %v456 = vunpack.c.l.b16 %v392
      %v457 = vunpack.c.l.b16 %v393
      %v458 = vunpack.c.l.b16 %v394
      %v459 = vunpack.c.l.b16 %v395
      %v460 = vunpack.c.l.b16 %v396
      %v461 = vunpack.c.l.b16 %v397
      %v462 = vunpack.c.l.b16 %v398
      %v463 = vunpack.c.l.b16 %v399
      %v464 = vunpack.c.l.b16 %v400
      %v465 = vunpack.c.l.b16 %v401
      %v466 = vunpack.c.l.b16 %v402
      %v467 = vunpack.c.l.b16 %v403
      %v468 = vunpack.c.l.b16 %v404
      %v469 = vunpack.c.l.b16 %v405
      %v470 = vunpack.c.l.b16 %v406
      %v471 = vunpack.c.l.b16 %v407
      %v472 = vunpack.c.l.b16 %v408
      %v473 = vunpack.c.l.b16 %v409
      %v474 = vunpack.c.l.b16 %v410
      %v475 = vunpack.c.l.b16 %v411
      %v476 = vunpack.c.l.b16 %v412
      %v477 = vunpack.c.l.b16 %v413
      %v478 = vunpack.c.l.b16 %v414
      %v479 = vunpack.c.l.b16 %v415
      %v480 = vunpack.c.l.b16 %v416
      %v481 = vunpack.c.l.b16 %v417
      %v482 = vunpack.c.l.b16 %v418
      %v483 = vpack.c.b16 %v452, %v451
      %v484 = vpack.c.b16 %v454, %v453
      %v485 = vpack.c.b16 %v456, %v455
      %v486 = vpack.c.b16 %v458, %v457
      %v487 = vpack.c.b16 %v460, %v459
      %v488 = vpack.c.b16 %v462, %v461
      %v489 = vpack.c.b16 %v464, %v463
      %v490 = vpack.c.b16 %v466, %v465
      %v491 = vpack.c.b16 %v468, %v467
      %v492 = vpack.c.b16 %v470, %v469
      %v493 = vpack.c.b16 %v472, %v471
      %v494 = vpack.c.b16 %v474, %v473
      %v495 = vpack.c.b16 %v476, %v475
      %v496 = vpack.c.b16 %v478, %v477
      %v497 = vpack.c.b16 %v480, %v479
      %v498 = vpack.c.b16 %v482, %v481
      %515 = vmatprep.subr.bf16.mxu0 0
      %516 = vmatpush1.bf16.msra.mxu0 %v483
      %517 = vmatprep.subr.bf16.mxu0 0
      %518 = vmatpush1.bf16.msra.mxu0 %v484
      %519 = vmatprep.subr.bf16.mxu0 0
      %520 = vmatpush1.bf16.msra.mxu0 %v485
      %521 = vmatprep.subr.bf16.mxu0 0
      %522 = vmatpush1.bf16.msra.mxu0 %v486
      %523 = vmatprep.subr.bf16.mxu0 0
      %524 = vmatpush1.bf16.msra.mxu0 %v487
      %525 = vmatprep.subr.bf16.mxu0 0
      %526 = vmatpush1.bf16.msra.mxu0 %v488
      %527 = vmatprep.subr.bf16.mxu0 0
      %528 = vmatpush1.bf16.msra.mxu0 %v489
      %529 = vmatprep.subr.bf16.mxu0 0
      %530 = vmatpush1.bf16.msra.mxu0 %v490
      %531 = vmatprep.subr.bf16.mxu0 0
      %532 = vmatpush1.bf16.msra.mxu0 %v491
      %533 = vmatprep.subr.bf16.mxu0 0
      %534 = vmatpush1.bf16.msra.mxu0 %v492
      %535 = vmatprep.subr.bf16.mxu0 0
      %536 = vmatpush1.bf16.msra.mxu0 %v493
      %537 = vmatprep.subr.bf16.mxu0 0
      %538 = vmatpush1.bf16.msra.mxu0 %v494
      %539 = vmatprep.subr.bf16.mxu0 0
      %540 = vmatpush1.bf16.msra.mxu0 %v495
      %541 = vmatprep.subr.bf16.mxu0 0
      %542 = vmatpush1.bf16.msra.mxu0 %v496
      %543 = vmatprep.subr.bf16.mxu0 0
      %544 = vmatpush1.bf16.msra.mxu0 %v497
      %545 = vmatprep.subr.bf16.mxu0 0
      %546 = vmatpush1.bf16.msra.mxu0 %v498
      %547 = vmatprep.mubr.bf16.mxu0 %v356
      %548 = vmatmul.mubr.bf16.gmra.mrb[0].mxu0 %v355
      %v549 = vpop.f32.mrb[0].mxu0
      %v550 = vadd.f32 0.0, %v549
      %v551 = vpop.f32.mrb[0].mxu0
      %v552 = vpop.f32.mrb[0].mxu0
      %v553 = vadd.f32 0.0, %v552
      %v554 = vpop.f32.mrb[0].mxu0
      %555 = vmatprep.mubr.bf16.mxu0 %v358
      %556 = vmatmul.mubr.bf16.gmra.mrb[0].mxu0 %v357
      %v557 = vpop.f32.mrb[0].mxu0
      %v558 = vadd.f32 0.0, %v557
      %v559 = vpop.f32.mrb[0].mxu0
      %v560 = vpop.f32.mrb[0].mxu0
      %v561 = vadd.f32 0.0, %v560
      %v562 = vpop.f32.mrb[0].mxu0
      %563 = vmatprep.mubr.bf16.mxu0 %v360
      %564 = vmatmul.mubr.bf16.gmra.mrb[0].mxu0 %v359
      %v565 = vpop.f32.mrb[0].mxu0
      %v566 = vadd.f32 0.0, %v565
      %v567 = vpop.f32.mrb[0].mxu0
      %v568 = vpop.f32.mrb[0].mxu0
      %v569 = vadd.f32 0.0, %v568
      %v570 = vpop.f32.mrb[0].mxu0
      %571 = vmatprep.mubr.bf16.mxu0 %v362
      %572 = vmatmul.mubr.bf16.gmra.mrb[0].mxu0 %v361
      %v573 = vpop.f32.mrb[0].mxu0
      %v574 = vadd.f32 0.0, %v573
      %v575 = vpop.f32.mrb[0].mxu0
      %v576 = vpop.f32.mrb[0].mxu0
      %v577 = vadd.f32 0.0, %v576
      %v578 = vpop.f32.mrb[0].mxu0
      %579 = vmatprep.mubr.bf16.mxu0 %v364
      %580 = vmatmul.mubr.bf16.gmra.mrb[0].mxu0 %v363
      %v581 = vpop.f32.mrb[0].mxu0
      %v582 = vadd.f32 0.0, %v581
      %v583 = vpop.f32.mrb[0].mxu0
      %v584 = vpop.f32.mrb[0].mxu0
      %v585 = vadd.f32 0.0, %v584
      %v586 = vpop.f32.mrb[0].mxu0
      %587 = vmatprep.mubr.bf16.mxu0 %v366
      %588 = vmatmul.mubr.bf16.gmra.mrb[0].mxu0 %v365
      %v589 = vpop.f32.mrb[0].mxu0
      %v590 = vadd.f32 0.0, %v589
      %v591 = vpop.f32.mrb[0].mxu0
      %v592 = vpop.f32.mrb[0].mxu0
      %v593 = vadd.f32 0.0, %v592
      %v594 = vpop.f32.mrb[0].mxu0
      %595 = vmatprep.mubr.bf16.mxu0 %v368
      %596 = vmatmul.mubr.bf16.gmra.mrb[0].mxu0 %v367
      %v597 = vpop.f32.mrb[0].mxu0
      %v598 = vadd.f32 0.0, %v597
      %v599 = vpop.f32.mrb[0].mxu0
      %v600 = vpop.f32.mrb[0].mxu0
      %v601 = vadd.f32 0.0, %v600
      %v602 = vpop.f32.mrb[0].mxu0
      %603 = vmatprep.mubr.bf16.mxu0 %v370
      %604 = vmatmul.mubr.bf16.gmra.mrb[0].mxu0 %v369
      %v605 = vpop.f32.mrb[0].mxu0
      %v606 = vadd.f32 0.0, %v605
      %v607 = vpop.f32.mrb[0].mxu0
      %v608 = vpop.f32.mrb[0].mxu0
      %v609 = vadd.f32 0.0, %v608
      %v610 = vpop.f32.mrb[0].mxu0
      %611 = vdwg.mxu0
      %v612 = vadd.f32 %v371, %v550
      %v613 = vadd.f32 %v372, %v553
      %v614 = vadd.f32 %v373, %v558
      %v615 = vadd.f32 %v374, %v561
      %v616 = vadd.f32 %v375, %v566
      %v617 = vadd.f32 %v376, %v569
      %v618 = vadd.f32 %v377, %v574
      %v619 = vadd.f32 %v378, %v577
      %v620 = vadd.f32 %v379, %v582
      %v621 = vadd.f32 %v380, %v585
      %v622 = vadd.f32 %v381, %v590
      %v623 = vadd.f32 %v382, %v593
      %v624 = vadd.f32 %v383, %v598
      %v625 = vadd.f32 %v384, %v601
      %v626 = vadd.f32 %v385, %v606
      %v627 = vadd.f32 %v386, %v609
      %vm628 = vcmask 261120
      %629 = vst.msk [vmem:[#allocation2] sm:$0xff] %vm628, %v612
      %630 = vst.msk [vmem:[#allocation2 + $0x8] sm:$0xff] %vm628, %v613
      %631 = vst.msk [vmem:[#allocation2 + $0x10] sm:$0xff] %vm628, %v614
      %632 = vst.msk [vmem:[#allocation2 + $0x18] sm:$0xff] %vm628, %v615
      %633 = vst.msk [vmem:[#allocation2 + $0x20] sm:$0xff] %vm628, %v616
      %634 = vst.msk [vmem:[#allocation2 + $0x28] sm:$0xff] %vm628, %v617
      %635 = vst.msk [vmem:[#allocation2 + $0x30] sm:$0xff] %vm628, %v618
      %636 = vst.msk [vmem:[#allocation2 + $0x38] sm:$0xff] %vm628, %v619
      %637 = vst.msk [vmem:[#allocation2 + $0x40] sm:$0xff] %vm628, %v620
      %638 = vst.msk [vmem:[#allocation2 + $0x48] sm:$0xff] %vm628, %v621
      %639 = vst.msk [vmem:[#allocation2 + $0x50] sm:$0xff] %vm628, %v622
      %640 = vst.msk [vmem:[#allocation2 + $0x58] sm:$0xff] %vm628, %v623
      %641 = vst.msk [vmem:[#allocation2 + $0x60] sm:$0xff] %vm628, %v624
      %642 = vst.msk [vmem:[#allocation2 + $0x68] sm:$0xff] %vm628, %v625
      %643 = vst.msk [vmem:[#allocation2 + $0x70] sm:$0xff] %vm628, %v626
      %644 = vst.msk [vmem:[#allocation2 + $0x78] sm:$0xff] %vm628, %v627
      // Predicated region
      $region45: #{tpu_custom_call.1} parent=39 // pred_check
        %p645 = pneg %p326
      $region46: #{tpu_custom_call.1} parent=39 // pred_check_branch
        %647 = sbr.rel (%p645) target = $region48
      $region47: #{tpu_custom_call.1} parent=39 // pred_region
        %v648 = vld [vmem:[#allocation2] sm:$0xff]
        %v649 = vld [vmem:[#allocation2 + $0x8] sm:$0xff]
        %v650 = vld [vmem:[#allocation2 + $0x10] sm:$0xff]
        %v651 = vld [vmem:[#allocation2 + $0x18] sm:$0xff]
        %v652 = vld [vmem:[#allocation2 + $0x20] sm:$0xff]
        %v653 = vld [vmem:[#allocation2 + $0x28] sm:$0xff]
        %v654 = vld [vmem:[#allocation2 + $0x30] sm:$0xff]
        %v655 = vld [vmem:[#allocation2 + $0x38] sm:$0xff]
        %v656 = vld [vmem:[#allocation2 + $0x40] sm:$0xff]
        %v657 = vld [vmem:[#allocation2 + $0x48] sm:$0xff]
        %v658 = vld [vmem:[#allocation2 + $0x50] sm:$0xff]
        %v659 = vld [vmem:[#allocation2 + $0x58] sm:$0xff]
        %v660 = vld [vmem:[#allocation2 + $0x60] sm:$0xff]
        %v661 = vld [vmem:[#allocation2 + $0x68] sm:$0xff]
        %v662 = vld [vmem:[#allocation2 + $0x70] sm:$0xff]
        %v663 = vld [vmem:[#allocation2 + $0x78] sm:$0xff]
        %v664 = vld [vmem:[%s317] sm:$0xff]
        %v665 = vld [vmem:[%s317 + $0x8] sm:$0xff]
        %v666 = vld [vmem:[%s317 + $0x10] sm:$0xff]
        %v667 = vld [vmem:[%s317 + $0x18] sm:$0xff]
        %v668 = vld [vmem:[%s317 + $0x20] sm:$0xff]
        %v669 = vld [vmem:[%s317 + $0x28] sm:$0xff]
        %v670 = vld [vmem:[%s317 + $0x30] sm:$0xff]
        %v671 = vld [vmem:[%s317 + $0x38] sm:$0xff]
        %v672 = vld [vmem:[%s317 + $0x40] sm:$0xff]
        %v673 = vld [vmem:[%s317 + $0x48] sm:$0xff]
        %v674 = vld [vmem:[%s317 + $0x50] sm:$0xff]
        %v675 = vld [vmem:[%s317 + $0x58] sm:$0xff]
        %v676 = vld [vmem:[%s317 + $0x60] sm:$0xff]
        %v677 = vld [vmem:[%s317 + $0x68] sm:$0xff]
        %v678 = vld [vmem:[%s317 + $0x70] sm:$0xff]
        %v679 = vld [vmem:[%s317 + $0x78] sm:$0xff]
        %681 = vset.pattern.permute.xlu0 0
        %682 = vperm.xlu0 %681, %v664
        %v683 = vpop.permute.xlu0 %682
        %686 = vset.pattern.permute.xlu0 0
        %687 = vperm.xlu0 %686, %v665
        %v688 = vpop.permute.xlu0 %687
        %691 = vset.pattern.permute.xlu0 0
        %692 = vperm.xlu0 %691, %v666
        %v693 = vpop.permute.xlu0 %692
        %696 = vset.pattern.permute.xlu0 0
        %697 = vperm.xlu0 %696, %v667
        %v698 = vpop.permute.xlu0 %697
        %701 = vset.pattern.permute.xlu0 0
        %702 = vperm.xlu0 %701, %v668
        %v703 = vpop.permute.xlu0 %702
        %706 = vset.pattern.permute.xlu0 0
        %707 = vperm.xlu0 %706, %v669
        %v708 = vpop.permute.xlu0 %707
        %711 = vset.pattern.permute.xlu0 0
        %712 = vperm.xlu0 %711, %v670
        %v713 = vpop.permute.xlu0 %712
        %716 = vset.pattern.permute.xlu0 0
        %717 = vperm.xlu0 %716, %v671
        %v718 = vpop.permute.xlu0 %717
        %721 = vset.pattern.permute.xlu0 0
        %722 = vperm.xlu0 %721, %v672
        %v723 = vpop.permute.xlu0 %722
        %726 = vset.pattern.permute.xlu0 0
        %727 = vperm.xlu0 %726, %v673
        %v728 = vpop.permute.xlu0 %727
        %731 = vset.pattern.permute.xlu0 0
        %732 = vperm.xlu0 %731, %v674
        %v733 = vpop.permute.xlu0 %732
        %736 = vset.pattern.permute.xlu0 0
        %737 = vperm.xlu0 %736, %v675
        %v738 = vpop.permute.xlu0 %737
        %741 = vset.pattern.permute.xlu0 0
        %742 = vperm.xlu0 %741, %v676
        %v743 = vpop.permute.xlu0 %742
        %746 = vset.pattern.permute.xlu0 0
        %747 = vperm.xlu0 %746, %v677
        %v748 = vpop.permute.xlu0 %747
        %751 = vset.pattern.permute.xlu0 0
        %752 = vperm.xlu0 %751, %v678
        %v753 = vpop.permute.xlu0 %752
        %756 = vset.pattern.permute.xlu0 0
        %757 = vperm.xlu0 %756, %v679
        %v758 = vpop.permute.xlu0 %757
        %v760 = vmul.f32 %v648, %v683
        %v761 = vmul.f32 %v649, %v688
        %v762 = vmul.f32 %v650, %v693
        %v763 = vmul.f32 %v651, %v698
        %v764 = vmul.f32 %v652, %v703
        %v765 = vmul.f32 %v653, %v708
        %v766 = vmul.f32 %v654, %v713
        %v767 = vmul.f32 %v655, %v718
        %v768 = vmul.f32 %v656, %v723
        %v769 = vmul.f32 %v657, %v728
        %v770 = vmul.f32 %v658, %v733
        %v771 = vmul.f32 %v659, %v738
        %v772 = vmul.f32 %v660, %v743
        %v773 = vmul.f32 %v661, %v748
        %v774 = vmul.f32 %v662, %v753
        %v775 = vmul.f32 %v663, %v758
        %v776 = vld [vmem:[%s311] sm:$0xff]
        %v777 = vld [vmem:[%s311 + $0x8] sm:$0xff]
        %v778 = vld [vmem:[%s311 + $0x10] sm:$0xff]
        %v779 = vld [vmem:[%s311 + $0x18] sm:$0xff]
        %v780 = vld [vmem:[%s311 + $0x20] sm:$0xff]
        %v781 = vld [vmem:[%s311 + $0x28] sm:$0xff]
        %v782 = vld [vmem:[%s311 + $0x30] sm:$0xff]
        %v783 = vld [vmem:[%s311 + $0x38] sm:$0xff]
        %v784 = vld [vmem:[%s311 + $0x40] sm:$0xff]
        %v785 = vld [vmem:[%s311 + $0x48] sm:$0xff]
        %v786 = vld [vmem:[%s311 + $0x50] sm:$0xff]
        %v787 = vld [vmem:[%s311 + $0x58] sm:$0xff]
        %v788 = vld [vmem:[%s311 + $0x60] sm:$0xff]
        %v789 = vld [vmem:[%s311 + $0x68] sm:$0xff]
        %v790 = vld [vmem:[%s311 + $0x70] sm:$0xff]
        %v791 = vld [vmem:[%s311 + $0x78] sm:$0xff]
        %v792 = vadd.f32 %v760, %v776
        %v793 = vadd.f32 %v761, %v777
        %v794 = vadd.f32 %v762, %v778
        %v795 = vadd.f32 %v763, %v779
        %v796 = vadd.f32 %v764, %v780
        %v797 = vadd.f32 %v765, %v781
        %v798 = vadd.f32 %v766, %v782
        %v799 = vadd.f32 %v767, %v783
        %v800 = vadd.f32 %v768, %v784
        %v801 = vadd.f32 %v769, %v785
        %v802 = vadd.f32 %v770, %v786
        %v803 = vadd.f32 %v771, %v787
        %v804 = vadd.f32 %v772, %v788
        %v805 = vadd.f32 %v773, %v789
        %v806 = vadd.f32 %v774, %v790
        %v807 = vadd.f32 %v775, %v791
        %v808 = vld [vmem:[%s4] sm:$0x1]
        %v810 = vlaneseq
        %v811 = vshrl.u32 %v810, 7
        %v812 = vsub.s32 0, %v811
        %v813 = vrot.slane %v808, %v812
        %v815 = vadd.f32 %v792, %v813
        %v816 = vadd.f32 %v793, %v813
        %v817 = vadd.f32 %v794, %v813
        %v818 = vadd.f32 %v795, %v813
        %v819 = vadd.f32 %v796, %v813
        %v820 = vadd.f32 %v797, %v813
        %v821 = vadd.f32 %v798, %v813
        %v822 = vadd.f32 %v799, %v813
        %v823 = vadd.f32 %v800, %v813
        %v824 = vadd.f32 %v801, %v813
        %v825 = vadd.f32 %v802, %v813
        %v826 = vadd.f32 %v803, %v813
        %v827 = vadd.f32 %v804, %v813
        %v828 = vadd.f32 %v805, %v813
        %v829 = vadd.f32 %v806, %v813
        %v830 = vadd.f32 %v807, %v813
        %v831 = vmax.f32 %v815, 0.0
        %v832 = vmax.f32 %v816, 0.0
        %v833 = vmax.f32 %v817, 0.0
        %v834 = vmax.f32 %v818, 0.0
        %v835 = vmax.f32 %v819, 0.0
        %v836 = vmax.f32 %v820, 0.0
        %v837 = vmax.f32 %v821, 0.0
        %v838 = vmax.f32 %v822, 0.0
        %v839 = vmax.f32 %v823, 0.0
        %v840 = vmax.f32 %v824, 0.0
        %v841 = vmax.f32 %v825, 0.0
        %v842 = vmax.f32 %v826, 0.0
        %v843 = vmax.f32 %v827, 0.0
        %v844 = vmax.f32 %v828, 0.0
        %v845 = vmax.f32 %v829, 0.0
        %v846 = vmax.f32 %v830, 0.0
        %v847 = vpack.c.bf16 %v832, %v831
        %v848 = vpack.c.bf16 %v834, %v833
        %v849 = vpack.c.bf16 %v836, %v835
        %v850 = vpack.c.bf16 %v838, %v837
        %v851 = vpack.c.bf16 %v840, %v839
        %v852 = vpack.c.bf16 %v842, %v841
        %v853 = vpack.c.bf16 %v844, %v843
        %v854 = vpack.c.bf16 %v846, %v845
        %v863 = vunpack.c.l.b16 %v847
        %v864 = vunpack.c.h.b16 %v847
        %v865 = vunpack.c.l.b16 %v848
        %v866 = vunpack.c.h.b16 %v848
        %v867 = vunpack.c.l.b16 %v849
        %v868 = vunpack.c.h.b16 %v849
        %v869 = vunpack.c.l.b16 %v850
        %v870 = vunpack.c.h.b16 %v850
        %v871 = vunpack.c.l.b16 %v851
        %v872 = vunpack.c.h.b16 %v851
        %v873 = vunpack.c.l.b16 %v852
        %v874 = vunpack.c.h.b16 %v852
        %v875 = vunpack.c.l.b16 %v853
        %v876 = vunpack.c.h.b16 %v853
        %v877 = vunpack.c.l.b16 %v854
        %v878 = vunpack.c.h.b16 %v854
        %v879 = vpack.c.b16 %v863, %v863
        %v880 = vpack.c.b16 %v864, %v864
        %v881 = vpack.c.b16 %v865, %v865
        %v882 = vpack.c.b16 %v866, %v866
        %v883 = vpack.c.b16 %v867, %v867
        %v884 = vpack.c.b16 %v868, %v868
        %v885 = vpack.c.b16 %v869, %v869
        %v886 = vpack.c.b16 %v870, %v870
        %v887 = vpack.c.b16 %v871, %v871
        %v888 = vpack.c.b16 %v872, %v872
        %v889 = vpack.c.b16 %v873, %v873
        %v890 = vpack.c.b16 %v874, %v874
        %v891 = vpack.c.b16 %v875, %v875
        %v892 = vpack.c.b16 %v876, %v876
        %v893 = vpack.c.b16 %v877, %v877
        %v894 = vpack.c.b16 %v878, %v878
        %vm911 = vcmask 257024
        %912 = vst.msk [vmem:[%s323] sm:$0xf] %vm911, %v879
        %913 = vst.msk [vmem:[%s323 + $0x4] sm:$0xf] %vm911, %v880
        %914 = vst.msk [vmem:[%s323 + $0x8] sm:$0xf] %vm911, %v881
        %915 = vst.msk [vmem:[%s323 + $0xc] sm:$0xf] %vm911, %v882
        %916 = vst.msk [vmem:[%s323 + $0x10] sm:$0xf] %vm911, %v883
        %917 = vst.msk [vmem:[%s323 + $0x14] sm:$0xf] %vm911, %v884
        %918 = vst.msk [vmem:[%s323 + $0x18] sm:$0xf] %vm911, %v885
        %919 = vst.msk [vmem:[%s323 + $0x1c] sm:$0xf] %vm911, %v886
        %920 = vst.msk [vmem:[%s323 + $0x20] sm:$0xf] %vm911, %v887
        %921 = vst.msk [vmem:[%s323 + $0x24] sm:$0xf] %vm911, %v888
        %922 = vst.msk [vmem:[%s323 + $0x28] sm:$0xf] %vm911, %v889
        %923 = vst.msk [vmem:[%s323 + $0x2c] sm:$0xf] %vm911, %v890
        %924 = vst.msk [vmem:[%s323 + $0x30] sm:$0xf] %vm911, %v891
        %925 = vst.msk [vmem:[%s323 + $0x34] sm:$0xf] %vm911, %v892
        %926 = vst.msk [vmem:[%s323 + $0x38] sm:$0xf] %vm911, %v893
        %927 = vst.msk [vmem:[%s323 + $0x3c] sm:$0xf] %vm911, %v894
      $region48: #{tpu_custom_call.1} parent=39 // pred_fallthru
        _
      %s928 = smul.u32 16, %s20
      %p929 = scmp.lt.s32.totalorder %s928, 31
      %s930 = scalar_select %p929, %s928, 31
      %s931 = smul.addr %s930, 4
      %s932 = scalar_lea.vmem %s5, %s931
      // Predicated region
      $region49: #{tpu_custom_call.1} parent=39 // pred_check
        %p933 = pneg %p173
      $region50: #{tpu_custom_call.1} parent=39 // pred_check_branch
        %935 = sbr.rel (%p933) target = $region52
      $region51: #{tpu_custom_call.1} parent=39 // pred_region
        %s936 = smul.u32 16, %s20
      $region52: #{tpu_custom_call.1} parent=39 // pred_fallthru
        _
    $region40: #{tpu_custom_call.1} parent=5 // pred_fallthru
      _
    %p937 = scmp.le.s32.totalorder 2, %s11
    // Predicated region
    $region53: #{tpu_custom_call.1} parent=5 // pred_check
      %p938 = pneg %p937
    $region54: #{tpu_custom_call.1} parent=5 // pred_check_branch
      %940 = sbr.rel (%p938) target = $region56
    $region55: #{tpu_custom_call.1} parent=5 // pred_region
      %s941 = ssub.s32 %s11, 2
      // Predicated region
      $region57: #{tpu_custom_call.1} parent=55 // pred_check
        %p942 = pneg %p179
      $region58: #{tpu_custom_call.1} parent=55 // pred_check_branch
        %944 = sbr.rel (%p942) target = $region60
      $region59: #{tpu_custom_call.1} parent=55 // pred_region
        %s945 = smul.u32 16, %s22
        %p946 = scmp.lt.s32.totalorder %s945, 31
        %s947 = scalar_select %p946, %s945, 31
        %s948 = smul.addr %s947, 4
        %s949 = scalar_lea.vmem %s5, %s948
      $region60: #{tpu_custom_call.1} parent=55 // pred_fallthru
        _
    $region56: #{tpu_custom_call.1} parent=5 // pred_fallthru
      _
  $region6: #{tpu_custom_call.1} parent=0 // loop_footer
    %s15 = sadd.s32 1, %s11
  $region7: #{tpu_custom_call.1} parent=0 // loop_footer_branch
    %10 = sbr.rel target = $region3
  $region8: #{tpu_custom_call.1} parent=0 // loop_exit
    _

</llo_original>
